<compile_context>
chip_gen: v6e
topology: v6e:2x2x1
jax: 0.10.0
libtpu: 0.0.40
codegen_flags: <defaults>
</compile_context>

<pallas_src>
import numpy as np
import jax
import jax.numpy as jnp
from jax.experimental import pallas as pl
from jax.experimental.pallas import tpu as pltpu

DIM = 3        # matches PositionalEncoder(dim=3)
MAX_SIZE = 96  # matches PositionalEncoder(max_size=96)

# Target per-block output size (bytes); keeps double-buffered in+out blocks well
# under the 16 MiB scoped-VMEM default on v5e and the 64 MiB physical VMEM on v7x.
_TARGET_BLOCK_BYTES = 2 * 1024 * 1024


def posenc_kernel(x_ref, emb_ref, out_ref):
    # x_ref:   (Bt, L, F)            batch tile of the input
    # emb_ref: (L, 2*DIM)            batch-invariant positional table (VMEM-resident)
    # out_ref: (Bt, L, F + 2*DIM)
    bt = x_ref.shape[0]
    emb_tile = jnp.broadcast_to(
        emb_ref[...][None], (bt,) + emb_ref.shape
    ).astype(out_ref.dtype)
    # Single full-tile store: [x | emb] along the feature axis.
    out_ref[...] = jnp.concatenate([x_ref[...], emb_tile], axis=-1)


def _pick_bt(batch: int, per_b_bytes: int) -> int:
    """Largest divisor of `batch` whose output block stays under the target size."""
    cap = max(1, min(batch, _TARGET_BLOCK_BYTES // max(1, per_b_bytes)))
    for bt in range(cap, 0, -1):
        if batch % bt == 0:
            return bt
    return 1


def positional_encoder(x: jax.Array, dim: int = DIM, max_size: int = MAX_SIZE) -> jax.Array:
    """Pallas equivalent of PositionalEncoder.forward. x: (B, L, F) -> (B, L, F + 2*dim)."""
    B, L, F = x.shape
    assert L <= max_size, "sequence length must not exceed max_size"
    out_feat = F + 2 * dim

    # Hoisted, batch-invariant positional table (matches the PyTorch parameter).
    pos = jnp.arange(max_size, dtype=jnp.float32)[:, None]
    mult = jnp.arange(1, dim + 1, dtype=jnp.float32)[None, :]
    matrix = pos * mult * (2.0 * np.pi / max_size)
    emb = jnp.concatenate([jnp.sin(matrix), jnp.cos(matrix)], axis=1)[:L]  # (L, 2*dim) f32
    # Note: emb stays float32 and is cast to x.dtype at store time (PyTorch keeps the
    # buffer in float32; only matters bitwise for reduced-precision inputs).

    itemsize = jnp.dtype(x.dtype).itemsize
    bt = _pick_bt(B, L * out_feat * itemsize)

    return pl.pallas_call(
        posenc_kernel,
        out_shape=jax.ShapeDtypeStruct((B, L, out_feat), x.dtype),
        grid=(B // bt,),
        in_specs=[
            pl.BlockSpec((bt, L, F), lambda b: (b, 0, 0)),
            pl.BlockSpec((L, 2 * dim), lambda b: (0, 0)),  # same block every step -> stays resident
        ],
        out_specs=pl.BlockSpec((bt, L, out_feat), lambda b: (b, 0, 0)),
        compiler_params=pltpu.CompilerParams(
            dimension_semantics=("parallel",),
            vmem_limit_bytes=32 * 1024 * 1024,
        ),
    )(x, emb)


if __name__ == "__main__":
    key = jax.random.PRNGKey(0)
    B, L, F = 2, 16, 8
    x = jax.random.normal(key, (B, L, F), dtype=jnp.float32)

    out = jax.block_until_ready(positional_encoder(x))

    # Pure-JAX reference reproducing the PyTorch module exactly.
    pos = jnp.arange(MAX_SIZE, dtype=jnp.float32)[:, None]
    mult = jnp.arange(1, DIM + 1, dtype=jnp.float32)[None, :]
    matrix = pos * mult * (2.0 * np.pi / MAX_SIZE)
    emb_param = jnp.concatenate([jnp.sin(matrix), jnp.cos(matrix)], axis=1)[None]  # (1, MAX_SIZE, 2*DIM)
    ref = jnp.concatenate([x, jnp.tile(emb_param[:, :L], (B, 1, 1))], axis=2)

    assert out.shape == (B, L, F + 2 * DIM), out.shape
    np.testing.assert_allclose(np.asarray(out), np.asarray(ref), rtol=1e-5, atol=1e-5)
    print("KERNEL_OK")
</pallas_src>

<mosaic_0001>
module attributes {stable_mosaic.version = 11 : i64} {
  func.func @posenc_kernel(%arg0: i32, %arg1: memref<2x16x8xf32, #tpu.memory_space<vmem>>, %arg2: memref<16x6xf32, #tpu.memory_space<vmem>>, %arg3: memref<2x16x14xf32, #tpu.memory_space<vmem>>) attributes {dimension_semantics = [#tpu.dimension_semantics<parallel>], iteration_bounds = array<i64: 1>, scalar_prefetch = 0 : i64, scratch_operands = 0 : i64, tpu.core_type = #tpu.core_type<tc>, window_params = [{transform_indices = @transform_0, window_bounds = array<i64: 2, 16, 8>}, {pipeline_mode = #tpu.pipeline_mode<synchronous>, transform_indices = @transform_1, window_bounds = array<i64: 16, 6>}, {transform_indices = @transform_2, window_bounds = array<i64: 2, 16, 14>}]} {
    %c0 = arith.constant 0 : index
    %c0_0 = arith.constant 0 : index
    %0 = vector.load %arg2[%c0, %c0_0] : memref<16x6xf32, #tpu.memory_space<vmem>>, vector<16x6xf32>
    %1 = vector.shape_cast %0 : vector<16x6xf32> to vector<1x16x6xf32>
    %2 = vector.shape_cast %1 : vector<1x16x6xf32> to vector<1x16x6xf32>
    %3 = vector.broadcast %2 : vector<1x16x6xf32> to vector<2x16x6xf32>
    %c0_1 = arith.constant 0 : index
    %c0_2 = arith.constant 0 : index
    %c0_3 = arith.constant 0 : index
    %4 = vector.load %arg1[%c0_1, %c0_2, %c0_3] : memref<2x16x8xf32, #tpu.memory_space<vmem>>, vector<2x16x8xf32>
    %5 = tpu.concatenate %4, %3 in 2 : vector<2x16x8xf32>, vector<2x16x6xf32> -> vector<2x16x14xf32>
    %c0_4 = arith.constant 0 : index
    %c0_5 = arith.constant 0 : index
    %c0_6 = arith.constant 0 : index
    %6 = vector.load %arg3[%c0_4, %c0_5, %c0_6] : memref<2x16x14xf32, #tpu.memory_space<vmem>>, vector<2x16x14xf32>
    tpu.vector_store %arg3[%c0_4, %c0_5, %c0_6], %5 {strides = array<i32>} : memref<2x16x14xf32, #tpu.memory_space<vmem>>, vector<2x16x14xf32>,
    return
  }
  func.func @transform_0(%arg0: i32) -> (i32, i32, i32) {
    %c0_i32 = arith.constant 0 : i32
    %c0_i32_0 = arith.constant 0 : i32
    %c0_i32_1 = arith.constant 0 : i32
    return %arg0, %c0_i32, %c0_i32_0 : i32, i32, i32
  }
  func.func @transform_1(%arg0: i32) -> (i32, i32) {
    %c0_i32 = arith.constant 0 : i32
    %c0_i32_0 = arith.constant 0 : i32
    %c0_i32_1 = arith.constant 0 : i32
    return %c0_i32, %c0_i32_0 : i32, i32
  }
  func.func @transform_2(%arg0: i32) -> (i32, i32, i32) {
    %c0_i32 = arith.constant 0 : i32
    %c0_i32_0 = arith.constant 0 : i32
    %c0_i32_1 = arith.constant 0 : i32
    return %arg0, %c0_i32, %c0_i32_0 : i32, i32, i32
  }
}

</mosaic_0001>

<llo_original>
// kernel: tpu_custom_call.1
$region0: #{tpu_custom_call.1}
  #allocation0 [shape = 'u32[]', space=smem, size = 0x4, offset = 0x4, fixed_abs, tag = 'smem constant byte address 0x4 - core index']
  #allocation1 [shape = 'u32[144,128]{1,0:T(1,128)}', space=vmem, size = 0x12000, scoped, tag = 'internal scratch']
  %s0 = inlined_call_operand.vmem [shape: f32[2,16,8], index: 0, kind: input, shape index: {}]
  %s1 = inlined_call_operand.vmem [shape: f32[16,6], index: 1, kind: input, shape index: {}]
  %s2 = inlined_call_operand.vmem [shape: f32[2,16,14], index: 2, kind: output, shape index: {}]
  %s3 = sld [smem:[#allocation0]]
  $region18: #{tpu_custom_call.1} parent=0
    _
  %s5 = ssub.s32 1, %s3
  %s6 = scalar_select 0, %s5, %s3
  // Predicated region
  $region2: #{tpu_custom_call.1} parent=0 // pred_check
    _
  $region3: #{tpu_custom_call.1} parent=0 // pred_check_branch
    %8 = sbr.rel (0) target = $region5
  $region4: #{tpu_custom_call.1} parent=0 // pred_region
    _
  $region5: #{tpu_custom_call.1} parent=0 // pred_fallthru
    _
  // Predicated region
  $region6: #{tpu_custom_call.1} parent=0 // pred_check
    _
  $region7: #{tpu_custom_call.1} parent=0 // pred_check_branch
    %10 = sbr.rel (0) target = $region9
  $region8: #{tpu_custom_call.1} parent=0 // pred_region
    _
  $region9: #{tpu_custom_call.1} parent=0 // pred_fallthru
    _
  %v11 = vld [vmem:[%s1] sm:$0xff]
  %v12 = vld [vmem:[%s1 + $0x8] sm:$0xff]
  %v13 = vld [vmem:[%s0] sm:$0xff]
  %v14 = vld [vmem:[%s0 + $0x8] sm:$0xff]
  %v15 = vld [vmem:[%s0 + $0x10] sm:$0xff]
  %v16 = vld [vmem:[%s0 + $0x18] sm:$0xff]
  %19 = vrot.lane.b32.xlu0 %v11, 8
  %v20 = vpop.permute.xlu0 %19
  %21 = vrot.lane.b32.xlu0 %v12, 8
  %v22 = vpop.permute.xlu0 %21
  %vm25 = vcmask 64512
  %v26 = vsel %vm25, %v13, %v20
  %v27 = vsel %vm25, %v14, %v22
  %v28 = vsel %vm25, %v15, %v20
  %v29 = vsel %vm25, %v16, %v22
  %vm30 = vcmask 113664
  %31 = vst.msk [vmem:[%s2] sm:$0xff] %vm30, %v26
  %32 = vst.msk [vmem:[%s2 + $0x8] sm:$0xff] %vm30, %v27
  %33 = vst.msk [vmem:[%s2 + $0x10] sm:$0xff] %vm30, %v28
  %34 = vst.msk [vmem:[%s2 + $0x18] sm:$0xff] %vm30, %v29
  // Predicated region
  $region10: #{tpu_custom_call.1} parent=0 // pred_check
    _
  $region11: #{tpu_custom_call.1} parent=0 // pred_check_branch
    %36 = sbr.rel (0) target = $region13
  $region12: #{tpu_custom_call.1} parent=0 // pred_region
    _
  $region13: #{tpu_custom_call.1} parent=0 // pred_fallthru
    _
  // Predicated region
  $region14: #{tpu_custom_call.1} parent=0 // pred_check
    _
  $region15: #{tpu_custom_call.1} parent=0 // pred_check_branch
    %38 = sbr.rel (0) target = $region17
  $region16: #{tpu_custom_call.1} parent=0 // pred_region
    _
  $region17: #{tpu_custom_call.1} parent=0 // pred_fallthru
    _

</llo_original>
